<compile_context>
chip_gen: v7x
topology: tpu7x:2x2x1
jax: 0.10.0
libtpu: 0.0.40
codegen_flags: <defaults>
</compile_context>

<pallas_src>
import functools

import jax
import jax.numpy as jnp
from jax import lax
from jax.experimental import pallas as pl
from jax.experimental.pallas import tpu as pltpu


def _chamfer_kernel(x_ref, yt_ref, out_ref, *, nyc):
    """One grid step = one block of Bt batches, fully reduced to one scalar.

    x_ref : (Bt, Nx, Dp)  gts block  (points on sublanes, zero-padded coords on lanes)
    yt_ref: (Bt, Dp, Ny)  preds block, pre-transposed (points lane-dense)
    out_ref: (1, 8, 128)  per-program partial-loss tile; scalar at [0, 0, 0]
    """
    bt, nx, _ = x_ref.shape
    ny = yt_ref.shape[2]

    x = x_ref[...]                                      # native dtype -> MXU LHS
    x32 = x.astype(jnp.float32)
    rx = jnp.sum(x32 * x32, axis=2, keepdims=True)      # (Bt, Nx, 1)

    # Online accumulators; expensive XLU lane reductions are deferred to block end.
    minj_f = jnp.full((bt, nx, 128), jnp.inf, jnp.float32)   # folded running min over j
    minj_r = jnp.full((bt, nx, 1), jnp.inf, jnp.float32)     # ragged-tail running min
    sum1_f = jnp.zeros((bt, 1, 128), jnp.float32)            # folded running sum_j of min_i
    sum1_r = jnp.zeros((bt, 1, 1), jnp.float32)              # ragged-tail running sum

    # TODO(synk): switch the chunk walk to lax.fori_loop + pl.ds (and tile Nx with
    # a second online-min) for very large point clouds; static unroll is fine up
    # to a few thousand points per cloud.
    for c0 in range(0, ny, nyc):
        c1 = min(c0 + nyc, ny)
        w = c1 - c0
        yt_c = yt_ref[:, :, c0:c1]                      # (Bt, Dp, w)
        y32 = yt_c.astype(jnp.float32)
        ry = jnp.sum(y32 * y32, axis=1, keepdims=True)  # (Bt, 1, w)

        # Pre-scale the (tiny) RHS by -2 so building P needs only adds.
        yts = yt_c * (-2.0)
        zzs = jnp.einsum("bid,bdj->bij", x, yts,
                         preferred_element_type=jnp.float32)   # MXU, (Bt, Nx, w)
        p = zzs + rx + ry                               # squared distances (f32)

        # torch.min(P, 1): min over gts points i for every j in this chunk.
        min_i = jnp.min(p, axis=1, keepdims=True)       # (Bt, 1, w)

        full = (w // 128) * 128
        for s in range(0, full, 128):                   # elementwise lane-vreg folds (VPU)
            minj_f = jnp.minimum(minj_f, p[:, :, s:s + 128])
            sum1_f = sum1_f + min_i[:, :, s:s + 128]
        if full < w:                                    # ragged tail (< 1 lane vreg)
            minj_r = jnp.minimum(
                minj_r, jnp.min(p[:, :, full:w], axis=2, keepdims=True))
            sum1_r = sum1_r + jnp.sum(min_i[:, :, full:w], axis=2, keepdims=True)

    # Single deferred lane/sublane reductions for the whole block.
    minj = jnp.minimum(jnp.min(minj_f, axis=2, keepdims=True), minj_r)  # (Bt, Nx, 1)
    loss_2 = jnp.sum(minj)                              # sum_i min_j
    loss_1 = jnp.sum(sum1_f) + jnp.sum(sum1_r)          # sum_j min_i
    total = (loss_1 + loss_2).astype(jnp.float32)

    # Lane-dense partial output tile: block scalar at [0,0,0], zeros elsewhere.
    sub = lax.broadcasted_iota(jnp.int32, out_ref.shape, 1)
    lane = lax.broadcasted_iota(jnp.int32, out_ref.shape, 2)
    out_ref[...] = jnp.where((sub == 0) & (lane == 0), total, jnp.float32(0.0))


def _round_up(v, m):
    return -(-v // m) * m


def _vmem_capacity_bytes():
    try:
        return int(pltpu.get_tpu_info().vmem_capacity_bytes)
    except Exception:  # older jax / query unavailable -> assume v5e/v6e-class VMEM
        return 128 * 1024 * 1024


def _block_vmem_bytes(bt, nx, ny, nyc, d_pad, itemsize):
    """Rough VMEM bytes for one grid step (padded tiles, double buffers, temps)."""
    nx_p = _round_up(nx, 8)
    ny_p = _round_up(ny, 128)
    nyc_p = _round_up(min(nyc, ny), 128)
    x_tile = bt * nx_p * 128 * itemsize * 2            # D lane-padded to 128; 2x buffered
    yt_tile = bt * max(d_pad, 8) * ny_p * itemsize * 2
    p_chunk = bt * nx_p * nyc_p * 4 * 2                # zz chunk + P chunk (f32)
    accs = bt * nx_p * 128 * 4 * 2                     # folded min/sum accumulators + slack
    out = 2 * 8 * 128 * 4
    return int(1.25 * (x_tile + yt_tile + p_chunk + accs + out)) + (2 << 20)


def _pick_tiling(b, nx, ny, d_pad, itemsize, budget):
    """Choose (batch block, Ny chunk) so one grid step fits the VMEM budget."""
    nyc = min(ny, 512)
    while nyc > 128 and _block_vmem_bytes(1, nx, ny, nyc, d_pad, itemsize) > budget:
        nyc = max(128, nyc // 2)
    # Keep >= 2 grid steps when B >= 2 so both v7x TensorCores get work.
    bt_cap = b if b < 2 else max(1, b // 2)
    bt_cap = min(bt_cap, 64)
    bt = 1
    for cand in range(1, bt_cap + 1):
        if _block_vmem_bytes(cand, nx, ny, nyc, d_pad, itemsize) <= budget:
            bt = cand
    # TODO(synk): if even (bt=1, nyc=128) exceeds the budget (Nx in the 100k+
    # range), additionally tile Nx with a second online accumulator.
    return bt, nyc


def chamfer_loss(preds, gts):
    """preds: (B, Ny, D), gts: (B, Nx, D) -> scalar f32 (ChamferLoss.forward)."""
    B, Nx, D = gts.shape
    Bp, Ny, Dp = preds.shape
    assert B == Bp and D == Dp

    # Per-chip VMEM budgeting (v7x: 64 MiB -> ~48 MiB limit; v5e/v6e: ~96 MiB).
    cap = _vmem_capacity_bytes()
    vmem_limit = min(int(0.75 * cap), 100 * 1024 * 1024)
    budget = int(0.85 * vmem_limit)

    # Zero-pad the coordinate dim to a sublane granule (8): distances unchanged,
    # and the matmul K dim / RHS sublane dim become aligned.
    d_pad = max(8, _round_up(D, 8))
    x = gts
    y = preds
    if d_pad != D:
        x = jnp.pad(x, ((0, 0), (0, 0), (0, d_pad - D)))
        y = jnp.pad(y, ((0, 0), (0, 0), (0, d_pad - D)))
    # Lane-dense preds layout, done once in the wrapper: (B, Ny, Dp) -> (B, Dp, Ny).
    yt = jnp.swapaxes(y, 1, 2)

    itemsize = jnp.dtype(x.dtype).itemsize
    bt, nyc = _pick_tiling(B, Nx, Ny, d_pad, itemsize, budget)
    num_blocks = (B + bt - 1) // bt

    # Non-divisor bt: pad the batch with all-zero clouds (their P is identically
    # zero, so they contribute exactly 0 to both chamfer terms).
    b_pad = num_blocks * bt
    if b_pad != B:
        x = jnp.pad(x, ((0, b_pad - B), (0, 0), (0, 0)))
        yt = jnp.pad(yt, ((0, b_pad - B), (0, 0), (0, 0)))

    flops = B * Nx * Ny * (2 * d_pad + 4)
    bytes_accessed = int(itemsize * (b_pad * Nx * d_pad + b_pad * d_pad * Ny)
                         + 4 * num_blocks * 8 * 128)

    partial = pl.pallas_call(
        functools.partial(_chamfer_kernel, nyc=nyc),
        out_shape=jax.ShapeDtypeStruct((num_blocks, 8, 128), jnp.float32),
        grid=(num_blocks,),
        in_specs=[
            pl.BlockSpec((bt, Nx, d_pad), lambda g: (g, 0, 0)),   # gts  (MXU LHS)
            pl.BlockSpec((bt, d_pad, Ny), lambda g: (g, 0, 0)),   # preds^T (MXU RHS)
        ],
        out_specs=pl.BlockSpec((1, 8, 128), lambda g: (g, 0, 0)),
        compiler_params=pltpu.CompilerParams(
            dimension_semantics=("parallel",),   # per-program partials -> race-free
            vmem_limit_bytes=vmem_limit,
        ),
        cost_estimate=pl.CostEstimate(
            flops=flops, transcendentals=0, bytes_accessed=bytes_accessed),
    )(x, yt)

    return jnp.sum(partial)


def chamfer_loss_ref(preds, gts):
    """Pure-JAX reference mirroring the PyTorch math, for validation."""
    x, y = gts, preds
    zz = jnp.einsum("bid,bjd->bij", x, y)
    rx = jnp.sum(x * x, axis=-1)[:, :, None]   # (B, Nx, 1)
    ry = jnp.sum(y * y, axis=-1)[:, None, :]   # (B, 1, Ny)
    P = rx + ry - 2.0 * zz                     # (B, Nx, Ny)
    return jnp.sum(jnp.min(P, axis=1)) + jnp.sum(jnp.min(P, axis=2))


if __name__ == "__main__":
    key = jax.random.PRNGKey(0)

    # Primary small test (typical point-cloud shapes for this module).
    k1, k2 = jax.random.split(key)
    gts = jax.random.normal(k1, (2, 128, 3), dtype=jnp.float32)
    preds = jax.random.normal(k2, (2, 128, 3), dtype=jnp.float32)
    loss = chamfer_loss(preds, gts)
    jax.block_until_ready(loss)
    loss_ref = chamfer_loss_ref(preds, gts)
    # Tolerance covers MXU f32 pass decomposition + summation-order differences.
    assert jnp.allclose(loss, loss_ref, rtol=2e-2, atol=1e-2), (loss, loss_ref)

    # Exercises the multi-chunk + ragged-tail + zero-padded-batch paths:
    # B=5 -> bt=2 (one zero batch pad), Ny=648 -> chunks of 512 and 136 (128+8).
    k3, k4 = jax.random.split(k2)
    gts2 = jax.random.normal(k3, (5, 64, 3), dtype=jnp.float32)
    preds2 = jax.random.normal(k4, (5, 648, 3), dtype=jnp.float32)
    loss2 = chamfer_loss(preds2, gts2)
    jax.block_until_ready(loss2)
    loss2_ref = chamfer_loss_ref(preds2, gts2)
    assert jnp.allclose(loss2, loss2_ref, rtol=2e-2, atol=1e-2), (loss2, loss2_ref)

    print("KERNEL_OK")
</pallas_src>

<mosaic_0001>
module attributes {stable_mosaic.version = 11 : i64} {
  func.func @_chamfer_kernel(%arg0: i32, %arg1: memref<1x128x8xf32, #tpu.memory_space<vmem>>, %arg2: memref<1x8x128xf32, #tpu.memory_space<vmem>>, %arg3: memref<1x8x128xf32, #tpu.memory_space<vmem>>) attributes {dimension_semantics = [#tpu.dimension_semantics<parallel>], iteration_bounds = array<i64: 2>, scalar_prefetch = 0 : i64, scratch_operands = 0 : i64, tpu.core_type = #tpu.core_type<tc>, window_params = [{transform_indices = @transform_0, window_bounds = array<i64: 1, 128, 8>}, {transform_indices = @transform_1, window_bounds = array<i64: 1, 8, 128>}, {transform_indices = @transform_2, window_bounds = array<i64: 1, 8, 128>}]} {
    %c0 = arith.constant 0 : index
    %c0_0 = arith.constant 0 : index
    %c0_1 = arith.constant 0 : index
    %0 = vector.load %arg1[%c0, %c0_0, %c0_1] : memref<1x128x8xf32, #tpu.memory_space<vmem>>, vector<1x128x8xf32>
    %1 = arith.mulf %0, %0 : vector<1x128x8xf32>
    %cst = arith.constant dense<0.000000e+00> : vector<1x128xf32>
    %2 = vector.multi_reduction <add>, %1, %cst [2] : vector<1x128x8xf32> to vector<1x128xf32>
    %3 = vector.shape_cast %2 : vector<1x128xf32> to vector<1x128x1xf32>
    %cst_2 = arith.constant 0x7F800000 : f32
    %4 = vector.broadcast %cst_2 : f32 to vector<1x128x128xf32>
    %cst_3 = arith.constant 0x7F800000 : f32
    %5 = vector.broadcast %cst_3 : f32 to vector<1x128x1xf32>
    %cst_4 = arith.constant 0.000000e+00 : f32
    %6 = vector.broadcast %cst_4 : f32 to vector<1x1x128xf32>
    %cst_5 = arith.constant 0.000000e+00 : f32
    %7 = vector.broadcast %cst_5 : f32 to vector<1x1x1xf32>
    %c0_6 = arith.constant 0 : index
    %c0_7 = arith.constant 0 : index
    %c0_8 = arith.constant 0 : index
    %8 = vector.load %arg2[%c0_6, %c0_7, %c0_8] : memref<1x8x128xf32, #tpu.memory_space<vmem>>, vector<1x8x128xf32>
    %9 = arith.mulf %8, %8 : vector<1x8x128xf32>
    %cst_9 = arith.constant dense<0.000000e+00> : vector<1x128xf32>
    %10 = vector.multi_reduction <add>, %9, %cst_9 [1] : vector<1x8x128xf32> to vector<1x128xf32>
    %11 = vector.shape_cast %10 : vector<1x128xf32> to vector<1x1x128xf32>
    %cst_10 = arith.constant -2.000000e+00 : f32
    %12 = vector.broadcast %cst_10 : f32 to vector<1x8x128xf32>
    %13 = arith.mulf %8, %12 : vector<1x8x128xf32>
    "tpu.trace_start"() <{level = 10 : i32, message = "bid,bdj->bij"}> : () -> ()
    %cst_11 = arith.constant dense<0.000000e+00> : vector<1x128x128xf32>
    %14 = tpu.matmul %0, %13, %cst_11 {dimension_numbers = #tpu.dot_dimension_numbers<[2], [1], [1], [2], [0, 0, 0, 1, 1, 2], [0], [0]>} : vector<1x128x8xf32>, vector<1x8x128xf32>, vector<1x128x128xf32> -> vector<1x128x128xf32>
    "tpu.trace_stop"() : () -> ()
    %15 = vector.broadcast %3 : vector<1x128x1xf32> to vector<1x128x128xf32>
    %16 = arith.addf %14, %15 : vector<1x128x128xf32>
    %17 = vector.broadcast %11 : vector<1x1x128xf32> to vector<1x128x128xf32>
    %18 = arith.addf %16, %17 : vector<1x128x128xf32>
    %cst_12 = arith.constant dense<0x7F800000> : vector<1x128xf32>
    %19 = vector.multi_reduction <minimumf>, %18, %cst_12 [1] : vector<1x128x128xf32> to vector<1x128xf32>
    %20 = vector.shape_cast %19 : vector<1x128xf32> to vector<1x1x128xf32>
    %21 = arith.minimumf %4, %18 : vector<1x128x128xf32>
    %22 = arith.addf %6, %20 : vector<1x1x128xf32>
    %cst_13 = arith.constant dense<0x7F800000> : vector<1x128xf32>
    %23 = vector.multi_reduction <minimumf>, %21, %cst_13 [2] : vector<1x128x128xf32> to vector<1x128xf32>
    %24 = vector.shape_cast %23 : vector<1x128xf32> to vector<1x128x1xf32>
    %25 = arith.minimumf %24, %5 : vector<1x128x1xf32>
    %26 = vector.shape_cast %25 : vector<1x128x1xf32> to vector<1x1x128x1xf32>
    %cst_14 = arith.constant dense<0.000000e+00> : vector<1xf32>
    %27 = vector.multi_reduction <add>, %26, %cst_14 [1, 2, 3] : vector<1x1x128x1xf32> to vector<1xf32>
    %28 = vector.shape_cast %27 : vector<1xf32> to vector<1x1x1x1xf32>
    %29 = vector.extract %28[0, 0, 0, 0] : f32 from vector<1x1x1x1xf32>
    %30 = vector.shape_cast %22 : vector<1x1x128xf32> to vector<1x1x1x128xf32>
    %cst_15 = arith.constant dense<0.000000e+00> : vector<1xf32>
    %31 = vector.multi_reduction <add>, %30, %cst_15 [1, 2, 3] : vector<1x1x1x128xf32> to vector<1xf32>
    %32 = vector.shape_cast %31 : vector<1xf32> to vector<1x1x1x1xf32>
    %33 = vector.extract %32[0, 0, 0, 0] : f32 from vector<1x1x1x1xf32>
    %34 = vector.shape_cast %7 : vector<1x1x1xf32> to vector<1x1x1x1xf32>
    %cst_16 = arith.constant dense<0.000000e+00> : vector<1xf32>
    %35 = vector.multi_reduction <add>, %34, %cst_16 [1, 2, 3] : vector<1x1x1x1xf32> to vector<1xf32>
    %36 = vector.shape_cast %35 : vector<1xf32> to vector<1x1x1x1xf32>
    %37 = vector.extract %36[0, 0, 0, 0] : f32 from vector<1x1x1x1xf32>
    %38 = arith.addf %33, %37 : f32
    %39 = arith.addf %38, %29 : f32
    %40 = tpu.iota {dimensions = array<i32: 1>} : vector<1x8x128xi32>
    %41 = tpu.iota {dimensions = array<i32: 2>} : vector<1x8x128xi32>
    %c0_i32 = arith.constant 0 : i32
    %42 = vector.broadcast %c0_i32 : i32 to vector<1x8x128xi32>
    %43 = arith.cmpi eq, %40, %42 : vector<1x8x128xi32>
    %c0_i32_17 = arith.constant 0 : i32
    %44 = vector.broadcast %c0_i32_17 : i32 to vector<1x8x128xi32>
    %45 = arith.cmpi eq, %41, %44 : vector<1x8x128xi32>
    %46 = arith.andi %43, %45 : vector<1x8x128xi1>
    %cst_18 = arith.constant 0.000000e+00 : f32
    %47 = vector.broadcast %39 : f32 to vector<1x8x128xf32>
    %48 = vector.broadcast %cst_18 : f32 to vector<1x8x128xf32>
    %49 = arith.select %46, %47, %48 : vector<1x8x128xi1>, vector<1x8x128xf32>
    %c0_19 = arith.constant 0 : index
    %c0_20 = arith.constant 0 : index
    %c0_21 = arith.constant 0 : index
    %50 = vector.load %arg3[%c0_19, %c0_20, %c0_21] : memref<1x8x128xf32, #tpu.memory_space<vmem>>, vector<1x8x128xf32>
    tpu.vector_store %arg3[%c0_19, %c0_20, %c0_21], %49 {strides = array<i32>} : memref<1x8x128xf32, #tpu.memory_space<vmem>>, vector<1x8x128xf32>,
    return
  }
  func.func @transform_0(%arg0: i32) -> (i32, i32, i32) {
    %c0_i32 = arith.constant 0 : i32
    %c0_i32_0 = arith.constant 0 : i32
    %c0_i32_1 = arith.constant 0 : i32
    return %arg0, %c0_i32, %c0_i32_0 : i32, i32, i32
  }
  func.func @transform_1(%arg0: i32) -> (i32, i32, i32) {
    %c0_i32 = arith.constant 0 : i32
    %c0_i32_0 = arith.constant 0 : i32
    %c0_i32_1 = arith.constant 0 : i32
    return %arg0, %c0_i32, %c0_i32_0 : i32, i32, i32
  }
  func.func @transform_2(%arg0: i32) -> (i32, i32, i32) {
    %c0_i32 = arith.constant 0 : i32
    %c0_i32_0 = arith.constant 0 : i32
    %c0_i32_1 = arith.constant 0 : i32
    return %arg0, %c0_i32, %c0_i32_0 : i32, i32, i32
  }
}

</mosaic_0001>

<llo_original>
// kernel: tpu_custom_call.1
$region0: #{tpu_custom_call.1}
  #allocation0 [shape = 'u32[]', space=smem, size = 0x4, offset = 0x4, fixed_abs, tag = 'smem constant byte address 0x4 - core index']
  #allocation1 [shape = 'u32[144,128]{1,0:T(1,128)}', space=vmem, size = 0x12000, scoped, tag = 'internal scratch']
  %s0 = inlined_call_operand.hbm [shape: f32[2,128,8], index: 0, kind: input, shape index: {}]
  %s1 = inlined_call_operand.hbm [shape: f32[2,8,128], index: 1, kind: input, shape index: {}]
  %s2 = inlined_call_operand.hbm [shape: f32[2,8,128], index: 2, kind: output, shape index: {}]
  %s3 = sld [smem:[#allocation0]]
  $region49: #{tpu_custom_call.1} parent=0
    _
  %s5 = ssub.s32 1, %s3
  %s6 = scalar_select 0, %s5, %s3
  $region1: #{tpu_custom_call.1} parent=0
    #allocation2 [shape = 'u8[131072]{0}', space=vmem, size = 0x20000, scoped, tag = 'input window, operand 0']
    #allocation3 [shape = 's32[2]{0}', space=sflag, size = 0x8, scoped, tag = 'scoped memory for tpu_custom_call.1']
    #allocation4 [shape = 's32[2]{0}', space=sflag, size = 0x8, scoped, tag = 'scoped memory for tpu_custom_call.1']
    #allocation5 [shape = 'u8[8192]{0}', space=vmem, size = 0x2000, scoped, tag = 'input window, operand 1']
    #allocation6 [shape = 's32[2]{0}', space=sflag, size = 0x8, scoped, tag = 'scoped memory for tpu_custom_call.1']
    #allocation7 [shape = 'u8[8192]{0}', space=vmem, size = 0x2000, scoped, tag = 'output window, operand 0']
    %7 = vsyncpa [#allocation3], 0
    %s8 = scalar_lea.sflag [#allocation3], 1
    %9 = vsyncpa %s8, 0
    %10 = vsyncpa [#allocation6], 0
    %s11 = scalar_lea.sflag [#allocation6], 1
    %12 = vsyncpa %s11, 0
    %13 = vsyncpa [#allocation4], 0
    %s14 = scalar_lea.sflag [#allocation4], 1
    %15 = vsyncpa %s14, 0
    loop: start=0, step=1, limit=4
    $region2: #{tpu_custom_call.1} parent=1 // loop_pre_header
      _
    $region3: #{tpu_custom_call.1} parent=1 // loop_header
      %s17 = sphi 0, %s21
      %p18 = scmp.ge.s32.totalorder %s17, 4
      %s27 = sphi 0, %s29
      %s30 = sphi 0, %s27
      %s31 = sphi 0, %s30
      %s47 = sphi 0, %s31
      %s53 = sphi 0, %s55
      %s56 = sphi 0, %s53
      %s57 = sphi 0, %s56
      %s73 = sphi 0, %s57
      %s79 = sphi 0, %s81
      %s82 = sphi 0, %s79
      %s83 = sphi 0, %s82
      %s99 = sphi 0, %s83
    $region4: #{tpu_custom_call.1} parent=1 // loop_header_branch
      %20 = sbr.rel (%p18) target = $region8
    $region5: #{tpu_custom_call.1} parent=1 // loop_body
      %s22 = ssub.s32 %s17, 1
      %s23 = ssub.s32 %s17, 2
      %s24 = sadd.s32 %s17, 1
      %s25 = ssub.s32 %s17, %s24
      %p26 = scmp.eq.s32.totalorder %s25, 0
      %s28 = sadd.s32 %s27, 1
      %s29 = scalar_select %p26, %s27, %s28
      %p32 = pneg %p26
      %p33 = scmp.eq.s32.totalorder %s17, 1
      %p34 = por %p32, %p33
      %p35 = scmp.ne.s32.totalorder %s27, %s30
      %p36 = scmp.eq.s32.totalorder %s17, 0
      %p37 = por %p35, %p36
      %p38 = scmp.ne.s32.totalorder %s27, %s30
      %p39 = scmp.eq.s32.totalorder %s22, 1
      %p40 = por %p38, %p39
      %p41 = scmp.ne.s32.totalorder %s30, %s31
      %p42 = scmp.eq.s32.totalorder %s22, 0
      %p43 = por %p41, %p42
      %p44 = scmp.ne.s32.totalorder %s30, %s31
      %p45 = scmp.eq.s32.totalorder %s23, 1
      %p46 = por %p44, %p45
      %p48 = scmp.ne.s32.totalorder %s31, %s47
      %p49 = scmp.eq.s32.totalorder %s23, 0
      %p50 = por %p48, %p49
      %s51 = ssub.s32 %s17, %s24
      %p52 = scmp.eq.s32.totalorder %s51, 0
      %s54 = sadd.s32 %s53, 1
      %s55 = scalar_select %p52, %s53, %s54
      %p58 = pneg %p52
      %p59 = scmp.eq.s32.totalorder %s17, 1
      %p60 = por %p58, %p59
      %p61 = scmp.ne.s32.totalorder %s53, %s56
      %p62 = scmp.eq.s32.totalorder %s17, 0
      %p63 = por %p61, %p62
      %p64 = scmp.ne.s32.totalorder %s53, %s56
      %p65 = scmp.eq.s32.totalorder %s22, 1
      %p66 = por %p64, %p65
      %p67 = scmp.ne.s32.totalorder %s56, %s57
      %p68 = scmp.eq.s32.totalorder %s22, 0
      %p69 = por %p67, %p68
      %p70 = scmp.ne.s32.totalorder %s56, %s57
      %p71 = scmp.eq.s32.totalorder %s23, 1
      %p72 = por %p70, %p71
      %p74 = scmp.ne.s32.totalorder %s57, %s73
      %p75 = scmp.eq.s32.totalorder %s23, 0
      %p76 = por %p74, %p75
      %s77 = ssub.s32 %s17, %s24
      %p78 = scmp.eq.s32.totalorder %s77, 0
      %s80 = sadd.s32 %s79, 1
      %s81 = scalar_select %p78, %s79, %s80
      %p84 = pneg %p78
      %p85 = scmp.eq.s32.totalorder %s17, 1
      %p86 = por %p84, %p85
      %p87 = scmp.ne.s32.totalorder %s79, %s82
      %p88 = scmp.eq.s32.totalorder %s17, 0
      %p89 = por %p87, %p88
      %p90 = scmp.ne.s32.totalorder %s79, %s82
      %p91 = scmp.eq.s32.totalorder %s22, 1
      %p92 = por %p90, %p91
      %p93 = scmp.ne.s32.totalorder %s82, %s83
      %p94 = scmp.eq.s32.totalorder %s22, 0
      %p95 = por %p93, %p94
      %p96 = scmp.ne.s32.totalorder %s82, %s83
      %p97 = scmp.eq.s32.totalorder %s23, 1
      %p98 = por %p96, %p97
      %p100 = scmp.ne.s32.totalorder %s83, %s99
      %p101 = scmp.eq.s32.totalorder %s23, 0
      %p102 = por %p100, %p101
      %p103 = scmp.le.s32.totalorder 1, %s17
      %p104 = scmp.lt.s32.totalorder %s17, 3
      %p105 = pnand %p103, %p104
      %p106 = pneg %p105
      // Predicated region
      $region9: #{tpu_custom_call.1} parent=5 // pred_check
        _
      $region10: #{tpu_custom_call.1} parent=5 // pred_check_branch
        %108 = sbr.rel (%p105) target = $region12
      $region11: #{tpu_custom_call.1} parent=5 // pred_region
        %s109 = ssub.s32 %s17, 1
      $region12: #{tpu_custom_call.1} parent=5 // pred_fallthru
        _
      %p110 = scmp.lt.s32.totalorder %s17, 2
      // Predicated region
      $region13: #{tpu_custom_call.1} parent=5 // pred_check
        %p111 = pneg %p110
      $region14: #{tpu_custom_call.1} parent=5 // pred_check_branch
        %113 = sbr.rel (%p111) target = $region16
      $region15: #{tpu_custom_call.1} parent=5 // pred_region
        // Predicated region
        $region17: #{tpu_custom_call.1} parent=15 // pred_check
          %p114 = pneg %p37
        $region18: #{tpu_custom_call.1} parent=15 // pred_check_branch
          %116 = sbr.rel (%p114) target = $region20
        $region19: #{tpu_custom_call.1} parent=15 // pred_region
          %s117 = sand.u32 %s27, 1
          %s118 = scalar_lea.sflag [#allocation3], %s117
          %s119 = sand.u32 %s27, 1
          %s120 = smul.addr %s119, 128
          %s121 = scalar_lea.vmem [#allocation2], %s120
          %s123 = ssub.s32 2048, 2048
          %124 = vsyncadd %s118, %s123
          %s125 = smul.addr %s17, 16
          %s126 = smul.addr %s125, 128
          %s127 = scalar_lea.hbm %s0, %s126
          %s128 = sshll.u32 %s121, 4
          %s129 = int_to_ptr.vmem [resolvable:$true] %s128
          %134 = dma.hbm_to_vmem [thread:$0]  %s127, 2048, %s129, %s118, 128, 128, 8
        $region20: #{tpu_custom_call.1} parent=15 // pred_fallthru
          _
        // Predicated region
        $region21: #{tpu_custom_call.1} parent=15 // pred_check
          %p135 = pneg %p63
        $region22: #{tpu_custom_call.1} parent=15 // pred_check_branch
          %137 = sbr.rel (%p135) target = $region24
        $region23: #{tpu_custom_call.1} parent=15 // pred_region
          %s138 = sand.u32 %s53, 1
          %s139 = scalar_lea.sflag [#allocation6], %s138
          %s140 = sand.u32 %s53, 1
          %s141 = smul.addr %s140, 8
          %s142 = scalar_lea.vmem [#allocation5], %s141
          %s144 = ssub.s32 128, 128
          %145 = vsyncadd %s139, %s144
          %s146 = smul.addr %s17, 128
          %s147 = scalar_lea.hbm %s1, %s146
          %s149 = sshll.u32 %s142, 4
          %s150 = int_to_ptr.vmem [resolvable:$true] %s149
          %152 = dma.hbm_to_vmem [thread:$0]  %s147, 128, %s150, %s139
        $region24: #{tpu_custom_call.1} parent=15 // pred_fallthru
          _
      $region16: #{tpu_custom_call.1} parent=5 // pred_fallthru
        _
      %p153 = scmp.le.s32.totalorder 1, %s17
      %p154 = scmp.lt.s32.totalorder %s17, 3
      %p155 = pnand %p153, %p154
      %p156 = pneg %p155
      // Predicated region
      $region25: #{tpu_custom_call.1} parent=5 // pred_check
        _
      $region26: #{tpu_custom_call.1} parent=5 // pred_check_branch
        %158 = sbr.rel (%p155) target = $region28
      $region27: #{tpu_custom_call.1} parent=5 // pred_region
        %s159 = ssub.s32 %s17, 1
        %s160 = sand.u32 %s30, 1
        %s161 = scalar_lea.sflag [#allocation3], %s160
        %s162 = sand.u32 %s30, 1
        %s163 = smul.addr %s162, 128
        %s164 = scalar_lea.vmem [#allocation2], %s163
        // Predicated region
        $region29: #{tpu_custom_call.1} parent=27 // pred_check
          %p165 = pneg %p43
        $region30: #{tpu_custom_call.1} parent=27 // pred_check_branch
          %167 = sbr.rel (%p165) target = $region32
        $region31: #{tpu_custom_call.1} parent=27 // pred_region
          %168 = dma.done %s161, 2048
        $region32: #{tpu_custom_call.1} parent=27 // pred_fallthru
          _
        %s169 = sand.u32 %s56, 1
        %s170 = scalar_lea.sflag [#allocation6], %s169
        %s171 = sand.u32 %s56, 1
        %s172 = smul.addr %s171, 8
        %s173 = scalar_lea.vmem [#allocation5], %s172
        // Predicated region
        $region33: #{tpu_custom_call.1} parent=27 // pred_check
          %p174 = pneg %p69
        $region34: #{tpu_custom_call.1} parent=27 // pred_check_branch
          %176 = sbr.rel (%p174) target = $region36
        $region35: #{tpu_custom_call.1} parent=27 // pred_region
          %177 = dma.done %s170, 128
        $region36: #{tpu_custom_call.1} parent=27 // pred_fallthru
          _
        %s178 = sand.u32 %s30, 1
        %s179 = scalar_lea.sflag [#allocation3], %s178
        %s180 = sand.u32 %s30, 1
        %s181 = smul.addr %s180, 128
        %s182 = scalar_lea.vmem [#allocation2], %s181
        %p183 = pneg %p43
        %p184 = pneg %p40
        %s185 = sand.u32 %s56, 1
        %s186 = scalar_lea.sflag [#allocation6], %s185
        %s187 = sand.u32 %s56, 1
        %s188 = smul.addr %s187, 8
        %s189 = scalar_lea.vmem [#allocation5], %s188
        %p190 = pneg %p69
        %p191 = pneg %p66
        %p192 = pneg %p95
        %p193 = pneg %p92
        %s194 = sand.u32 %s82, 1
        %s195 = scalar_lea.sflag [#allocation4], %s194
        %s196 = sand.u32 %s82, 1
        %s197 = smul.addr %s196, 8
        %s198 = scalar_lea.vmem [#allocation7], %s197
        %v199 = vld [vmem:[%s164] sm:$0xff]
        %v200 = vld [vmem:[%s164 + $0x8] sm:$0xff]
        %v201 = vld [vmem:[%s164 + $0x10] sm:$0xff]
        %v202 = vld [vmem:[%s164 + $0x18] sm:$0xff]
        %v203 = vld [vmem:[%s164 + $0x20] sm:$0xff]
        %v204 = vld [vmem:[%s164 + $0x28] sm:$0xff]
        %v205 = vld [vmem:[%s164 + $0x30] sm:$0xff]
        %v206 = vld [vmem:[%s164 + $0x38] sm:$0xff]
        %v207 = vld [vmem:[%s164 + $0x40] sm:$0xff]
        %v208 = vld [vmem:[%s164 + $0x48] sm:$0xff]
        %v209 = vld [vmem:[%s164 + $0x50] sm:$0xff]
        %v210 = vld [vmem:[%s164 + $0x58] sm:$0xff]
        %v211 = vld [vmem:[%s164 + $0x60] sm:$0xff]
        %v212 = vld [vmem:[%s164 + $0x68] sm:$0xff]
        %v213 = vld [vmem:[%s164 + $0x70] sm:$0xff]
        %v214 = vld [vmem:[%s164 + $0x78] sm:$0xff]
        %v215 = vmul.f32 %v199, %v199
        %v216 = vmul.f32 %v200, %v200
        %v217 = vmul.f32 %v201, %v201
        %v218 = vmul.f32 %v202, %v202
        %v219 = vmul.f32 %v203, %v203
        %v220 = vmul.f32 %v204, %v204
        %v221 = vmul.f32 %v205, %v205
        %v222 = vmul.f32 %v206, %v206
        %v223 = vmul.f32 %v207, %v207
        %v224 = vmul.f32 %v208, %v208
        %v225 = vmul.f32 %v209, %v209
        %v226 = vmul.f32 %v210, %v210
        %v227 = vmul.f32 %v211, %v211
        %v228 = vmul.f32 %v212, %v212
        %v229 = vmul.f32 %v213, %v213
        %v230 = vmul.f32 %v214, %v214
        %vm231 = vcmask 64512
        %v232 = vsel %vm231, %v215, 0.0
        %233 = vadd.xlane.f32.xlu0 %v232
        %v234 = vpop.xlane.xlu0 %233
        %v235 = vsel %vm231, %v216, 0.0
        %236 = vadd.xlane.f32.xlu0 %v235
        %v237 = vpop.xlane.xlu0 %236
        %v238 = vsel %vm231, %v217, 0.0
        %239 = vadd.xlane.f32.xlu0 %v238
        %v240 = vpop.xlane.xlu0 %239
        %v241 = vsel %vm231, %v218, 0.0
        %242 = vadd.xlane.f32.xlu0 %v241
        %v243 = vpop.xlane.xlu0 %242
        %v244 = vsel %vm231, %v219, 0.0
        %245 = vadd.xlane.f32.xlu0 %v244
        %v246 = vpop.xlane.xlu0 %245
        %v247 = vsel %vm231, %v220, 0.0
        %248 = vadd.xlane.f32.xlu0 %v247
        %v249 = vpop.xlane.xlu0 %248
        %v250 = vsel %vm231, %v221, 0.0
        %251 = vadd.xlane.f32.xlu0 %v250
        %v252 = vpop.xlane.xlu0 %251
        %v253 = vsel %vm231, %v222, 0.0
        %254 = vadd.xlane.f32.xlu0 %v253
        %v255 = vpop.xlane.xlu0 %254
        %v256 = vsel %vm231, %v223, 0.0
        %257 = vadd.xlane.f32.xlu0 %v256
        %v258 = vpop.xlane.xlu0 %257
        %v259 = vsel %vm231, %v224, 0.0
        %260 = vadd.xlane.f32.xlu0 %v259
        %v261 = vpop.xlane.xlu0 %260
        %v262 = vsel %vm231, %v225, 0.0
        %263 = vadd.xlane.f32.xlu0 %v262
        %v264 = vpop.xlane.xlu0 %263
        %v265 = vsel %vm231, %v226, 0.0
        %266 = vadd.xlane.f32.xlu0 %v265
        %v267 = vpop.xlane.xlu0 %266
        %v268 = vsel %vm231, %v227, 0.0
        %269 = vadd.xlane.f32.xlu0 %v268
        %v270 = vpop.xlane.xlu0 %269
        %v271 = vsel %vm231, %v228, 0.0
        %272 = vadd.xlane.f32.xlu0 %v271
        %v273 = vpop.xlane.xlu0 %272
        %v274 = vsel %vm231, %v229, 0.0
        %275 = vadd.xlane.f32.xlu0 %v274
        %v276 = vpop.xlane.xlu0 %275
        %v277 = vsel %vm231, %v230, 0.0
        %278 = vadd.xlane.f32.xlu0 %v277
        %v279 = vpop.xlane.xlu0 %278
        %v280 = vld [vmem:[%s173] sm:$0xff]
        %v281 = vmul.f32 %v280, %v280
        %v282 = vrot.slane %v281, 4
        %v283 = vadd.f32 %v281, %v282
        %v284 = vrot.slane %v283, 2
        %v285 = vadd.f32 %v283, %v284
        %v286 = vrot.slane %v285, 1
        %v287 = vadd.f32 %v285, %v286
        %v288 = vmul.f32 %v280, -2.0
        %v290 = vsel %vm231, %v199, 0
        %v293 = vsel %vm231, %v200, 0
        %v296 = vsel %vm231, %v201, 0
        %v299 = vsel %vm231, %v202, 0
        %v302 = vsel %vm231, %v203, 0
        %v305 = vsel %vm231, %v204, 0
        %v308 = vsel %vm231, %v205, 0
        %v311 = vsel %vm231, %v206, 0
        %v314 = vsel %vm231, %v207, 0
        %v317 = vsel %vm231, %v208, 0
        %v320 = vsel %vm231, %v209, 0
        %v323 = vsel %vm231, %v210, 0
        %v326 = vsel %vm231, %v211, 0
        %v329 = vsel %vm231, %v212, 0
        %v332 = vsel %vm231, %v213, 0
        %v335 = vsel %vm231, %v214, 0
        %337 = vmatprep.subr.mxu0 0.0
        %338 = vmatpush1.msra.mxu0 %v288
        %339 = vmatprep.subr.mxu0 0.0
        %340 = vmatpush1.msra.mxu0 0.0
        %341 = vmatprep.subr.mxu0 0.0
        %342 = vmatpush1.msra.mxu0 0.0
        %343 = vmatprep.subr.mxu0 0.0
        %344 = vmatpush1.msra.mxu0 0.0
        %345 = vmatprep.subr.mxu0 0.0
        %346 = vmatpush1.msra.mxu0 0.0
        %347 = vmatprep.subr.mxu0 0.0
        %348 = vmatpush1.msra.mxu0 0.0
        %349 = vmatprep.subr.mxu0 0.0
        %350 = vmatpush1.msra.mxu0 0.0
        %351 = vmatprep.subr.mxu0 0.0
        %352 = vmatpush1.msra.mxu0 0.0
        %353 = vmatprep.subr.mxu0 0.0
        %354 = vmatpush1.msra.mxu0 0.0
        %355 = vmatprep.subr.mxu0 0.0
        %356 = vmatpush1.msra.mxu0 0.0
        %357 = vmatprep.subr.mxu0 0.0
        %358 = vmatpush1.msra.mxu0 0.0
        %359 = vmatprep.subr.mxu0 0.0
        %360 = vmatpush1.msra.mxu0 0.0
        %361 = vmatprep.subr.mxu0 0.0
        %362 = vmatpush1.msra.mxu0 0.0
        %363 = vmatprep.subr.mxu0 0.0
        %364 = vmatpush1.msra.mxu0 0.0
        %365 = vmatprep.subr.mxu0 0.0
        %366 = vmatpush1.msra.mxu0 0.0
        %367 = vmatprep.subr.mxu0 0.0
        %368 = vmatpush1.msra.mxu0 0.0
        %369 = vmatprep.subr.mxu0 0.0
        %370 = vmatpush1.msra.mxu0 0.0
        %371 = vmatprep.subr.mxu0 0.0
        %372 = vmatpush1.msra.mxu0 0.0
        %373 = vmatprep.subr.mxu0 0.0
        %374 = vmatpush1.msra.mxu0 0.0
        %375 = vmatprep.subr.mxu0 0.0
        %376 = vmatpush1.msra.mxu0 0.0
        %377 = vmatprep.subr.mxu0 0.0
        %378 = vmatpush1.msra.mxu0 0.0
        %379 = vmatprep.subr.mxu0 0.0
        %380 = vmatpush1.msra.mxu0 0.0
        %381 = vmatprep.subr.mxu0 0.0
        %382 = vmatpush1.msra.mxu0 0.0
        %383 = vmatprep.subr.mxu0 0.0
        %384 = vmatpush1.msra.mxu0 0.0
        %385 = vmatprep.subr.mxu0 0.0
        %386 = vmatpush1.msra.mxu0 0.0
        %387 = vmatprep.subr.mxu0 0.0
        %388 = vmatpush1.msra.mxu0 0.0
        %389 = vmatprep.subr.mxu0 0.0
        %390 = vmatpush1.msra.mxu0 0.0
        %391 = vmatprep.subr.mxu0 0.0
        %392 = vmatpush1.msra.mxu0 0.0
        %393 = vmatprep.subr.mxu0 0.0
        %394 = vmatpush1.msra.mxu0 0.0
        %395 = vmatprep.subr.mxu0 0.0
        %396 = vmatpush1.msra.mxu0 0.0
        %397 = vmatprep.subr.mxu0 0.0
        %398 = vmatpush1.msra.mxu0 0.0
        %399 = vmatprep.subr.mxu0 0.0
        %400 = vmatpush1.msra.mxu0 0.0
        %401 = vmatprep.mubr.f32.mxu0 0.0
        %402 = vmatmul.mubr.f32.gmra.mrb[0].mxu0 %v290
        %v403 = vpop.f32.mrb[0].mxu0
        %v404 = vadd.f32 %v234, %v403
        %v405 = vpop.f32.mrb[0].mxu0
        %406 = vmatprep.mubr.f32.mxu0 0.0
        %407 = vmatmul.mubr.f32.gmra.mrb[0].mxu0 %v293
        %v408 = vpop.f32.mrb[0].mxu0
        %v409 = vadd.f32 %v237, %v408
        %v410 = vpop.f32.mrb[0].mxu0
        %411 = vmatprep.mubr.f32.mxu0 0.0
        %412 = vmatmul.mubr.f32.gmra.mrb[0].mxu0 %v296
        %v413 = vpop.f32.mrb[0].mxu0
        %v414 = vadd.f32 %v240, %v413
        %v415 = vpop.f32.mrb[0].mxu0
        %416 = vmatprep.mubr.f32.mxu0 0.0
        %417 = vmatmul.mubr.f32.gmra.mrb[0].mxu0 %v299
        %v418 = vpop.f32.mrb[0].mxu0
        %v419 = vadd.f32 %v243, %v418
        %v420 = vpop.f32.mrb[0].mxu0
        %421 = vmatprep.mubr.f32.mxu0 0.0
        %422 = vmatmul.mubr.f32.gmra.mrb[0].mxu0 %v302
        %v423 = vpop.f32.mrb[0].mxu0
        %v424 = vadd.f32 %v246, %v423
        %v425 = vpop.f32.mrb[0].mxu0
        %426 = vmatprep.mubr.f32.mxu0 0.0
        %427 = vmatmul.mubr.f32.gmra.mrb[0].mxu0 %v305
        %v428 = vpop.f32.mrb[0].mxu0
        %v429 = vadd.f32 %v249, %v428
        %v430 = vpop.f32.mrb[0].mxu0
        %431 = vmatprep.mubr.f32.mxu0 0.0
        %432 = vmatmul.mubr.f32.gmra.mrb[0].mxu0 %v308
        %v433 = vpop.f32.mrb[0].mxu0
        %v434 = vadd.f32 %v252, %v433
        %v435 = vpop.f32.mrb[0].mxu0
        %436 = vmatprep.mubr.f32.mxu0 0.0
        %437 = vmatmul.mubr.f32.gmra.mrb[0].mxu0 %v311
        %v438 = vpop.f32.mrb[0].mxu0
        %v439 = vadd.f32 %v255, %v438
        %v440 = vpop.f32.mrb[0].mxu0
        %441 = vmatprep.mubr.f32.mxu0 0.0
        %442 = vmatmul.mubr.f32.gmra.mrb[0].mxu0 %v314
        %v443 = vpop.f32.mrb[0].mxu0
        %v444 = vadd.f32 %v258, %v443
        %v445 = vpop.f32.mrb[0].mxu0
        %446 = vmatprep.mubr.f32.mxu0 0.0
        %447 = vmatmul.mubr.f32.gmra.mrb[0].mxu0 %v317
        %v448 = vpop.f32.mrb[0].mxu0
        %v449 = vadd.f32 %v261, %v448
        %v450 = vpop.f32.mrb[0].mxu0
        %451 = vmatprep.mubr.f32.mxu0 0.0
        %452 = vmatmul.mubr.f32.gmra.mrb[0].mxu0 %v320
        %v453 = vpop.f32.mrb[0].mxu0
        %v454 = vadd.f32 %v264, %v453
        %v455 = vpop.f32.mrb[0].mxu0
        %456 = vmatprep.mubr.f32.mxu0 0.0
        %457 = vmatmul.mubr.f32.gmra.mrb[0].mxu0 %v323
        %v458 = vpop.f32.mrb[0].mxu0
        %v459 = vadd.f32 %v267, %v458
        %v460 = vpop.f32.mrb[0].mxu0
        %461 = vmatprep.mubr.f32.mxu0 0.0
        %462 = vmatmul.mubr.f32.gmra.mrb[0].mxu0 %v326
        %v463 = vpop.f32.mrb[0].mxu0
        %v464 = vadd.f32 %v270, %v463
        %v465 = vpop.f32.mrb[0].mxu0
        %466 = vmatprep.mubr.f32.mxu0 0.0
        %467 = vmatmul.mubr.f32.gmra.mrb[0].mxu0 %v329
        %v468 = vpop.f32.mrb[0].mxu0
        %v469 = vadd.f32 %v273, %v468
        %v470 = vpop.f32.mrb[0].mxu0
        %471 = vmatprep.mubr.f32.mxu0 0.0
        %472 = vmatmul.mubr.f32.gmra.mrb[0].mxu0 %v332
        %v473 = vpop.f32.mrb[0].mxu0
        %v474 = vadd.f32 %v276, %v473
        %v475 = vpop.f32.mrb[0].mxu0
        %476 = vmatprep.mubr.f32.mxu0 0.0
        %477 = vmatmul.mubr.f32.gmra.mrb[0].mxu0 %v335
        %v478 = vpop.f32.mrb[0].mxu0
        %v479 = vadd.f32 %v279, %v478
        %v480 = vpop.f32.mrb[0].mxu0
        %481 = vdwg.mxu0
        %v482 = vadd.f32 %v404, %v287
        %v483 = vadd.f32 %v409, %v287
        %v484 = vadd.f32 %v414, %v287
        %v485 = vadd.f32 %v419, %v287
        %v486 = vadd.f32 %v424, %v287
        %v487 = vadd.f32 %v429, %v287
        %v488 = vadd.f32 %v434, %v287
        %v489 = vadd.f32 %v439, %v287
        %v490 = vadd.f32 %v444, %v287
        %v491 = vadd.f32 %v449, %v287
        %v492 = vadd.f32 %v454, %v287
        %v493 = vadd.f32 %v459, %v287
        %v494 = vadd.f32 %v464, %v287
        %v495 = vadd.f32 %v469, %v287
        %v496 = vadd.f32 %v474, %v287
        %v497 = vadd.f32 %v479, %v287
        %v498 = vmin.f32 %v482, %v486
        %v499 = vmin.f32 %v483, %v487
        %v500 = vmin.f32 %v484, %v488
        %v501 = vmin.f32 %v485, %v489
        %v502 = vmin.f32 %v498, %v490
        %v503 = vmin.f32 %v499, %v491
        %v504 = vmin.f32 %v500, %v492
        %v505 = vmin.f32 %v501, %v493
        %v506 = vmin.f32 %v502, %v494
        %v507 = vmin.f32 %v503, %v495
        %v508 = vmin.f32 %v504, %v496
        %v509 = vmin.f32 %v505, %v497
        %v510 = vmin.f32 %v506, %v507
        %v511 = vmin.f32 %v508, %v509
        %v512 = vmin.f32 %v510, %v511
        %v513 = vrot.slane %v512, 4
        %v514 = vmin.f32 %v512, %v513
        %v515 = vrot.slane %v514, 2
        %v516 = vmin.f32 %v514, %v515
        %v517 = vrot.slane %v516, 1
        %v518 = vmin.f32 %v516, %v517
        %v519 = vadd.f32 %v518, 0.0
        %520 = vmin.xlane.f32.xlu0 %v482
        %v521 = vpop.xlane.xlu0 %520
        %522 = vmin.xlane.f32.xlu0 %v483
        %v523 = vpop.xlane.xlu0 %522
        %524 = vmin.xlane.f32.xlu0 %v484
        %v525 = vpop.xlane.xlu0 %524
        %526 = vmin.xlane.f32.xlu0 %v485
        %v527 = vpop.xlane.xlu0 %526
        %528 = vmin.xlane.f32.xlu0 %v486
        %v529 = vpop.xlane.xlu0 %528
        %530 = vmin.xlane.f32.xlu0 %v487
        %v531 = vpop.xlane.xlu0 %530
        %532 = vmin.xlane.f32.xlu0 %v488
        %v533 = vpop.xlane.xlu0 %532
        %534 = vmin.xlane.f32.xlu0 %v489
        %v535 = vpop.xlane.xlu0 %534
        %536 = vmin.xlane.f32.xlu0 %v490
        %v537 = vpop.xlane.xlu0 %536
        %538 = vmin.xlane.f32.xlu0 %v491
        %v539 = vpop.xlane.xlu0 %538
        %540 = vmin.xlane.f32.xlu0 %v492
        %v541 = vpop.xlane.xlu0 %540
        %542 = vmin.xlane.f32.xlu0 %v493
        %v543 = vpop.xlane.xlu0 %542
        %544 = vmin.xlane.f32.xlu0 %v494
        %v545 = vpop.xlane.xlu0 %544
        %546 = vmin.xlane.f32.xlu0 %v495
        %v547 = vpop.xlane.xlu0 %546
        %548 = vmin.xlane.f32.xlu0 %v496
        %v549 = vpop.xlane.xlu0 %548
        %550 = vmin.xlane.f32.xlu0 %v497
        %v551 = vpop.xlane.xlu0 %550
        %vm552 = vcmask 7168
        %v553 = vsel %vm552, %v521, 0.0
        %v554 = vsel %vm552, %v523, 0.0
        %v555 = vadd.f32 %v553, %v554
        %v556 = vsel %vm552, %v525, 0.0
        %v557 = vadd.f32 %v555, %v556
        %v558 = vsel %vm552, %v527, 0.0
        %v559 = vadd.f32 %v557, %v558
        %v560 = vsel %vm552, %v529, 0.0
        %v561 = vadd.f32 %v559, %v560
        %v562 = vsel %vm552, %v531, 0.0
        %v563 = vadd.f32 %v561, %v562
        %v564 = vsel %vm552, %v533, 0.0
        %v565 = vadd.f32 %v563, %v564
        %v566 = vsel %vm552, %v535, 0.0
        %v567 = vadd.f32 %v565, %v566
        %v568 = vsel %vm552, %v537, 0.0
        %v569 = vadd.f32 %v567, %v568
        %v570 = vsel %vm552, %v539, 0.0
        %v571 = vadd.f32 %v569, %v570
        %v572 = vsel %vm552, %v541, 0.0
        %v573 = vadd.f32 %v571, %v572
        %v574 = vsel %vm552, %v543, 0.0
        %v575 = vadd.f32 %v573, %v574
        %v576 = vsel %vm552, %v545, 0.0
        %v577 = vadd.f32 %v575, %v576
        %v578 = vsel %vm552, %v547, 0.0
        %v579 = vadd.f32 %v577, %v578
        %v580 = vsel %vm552, %v549, 0.0
        %v581 = vadd.f32 %v579, %v580
        %v582 = vsel %vm552, %v551, 0.0
        %v583 = vadd.f32 %v581, %v582
        %584 = vadd.xlane.f32.xlu0 %v583
        %v585 = vpop.xlane.xlu0 %584
        %v586 = vrot.slane %v585, 4
        %v587 = vadd.f32 %v585, %v586
        %v588 = vrot.slane %v587, 2
        %v589 = vadd.f32 %v587, %v588
        %v590 = vrot.slane %v589, 1
        %v591 = vadd.f32 %v589, %v590
        %s592 = vtos %v591
        %vm593 = vcmask 1040384
        %v594 = vsel %vm593, %v519, 0.0
        %595 = vadd.xlane.f32.xlu0 %v594
        %v596 = vpop.xlane.xlu0 %595
        %v597 = vrot.slane %v596, 4
        %v598 = vadd.f32 %v596, %v597
        %v599 = vrot.slane %v598, 2
        %v600 = vadd.f32 %v598, %v599
        %v601 = vrot.slane %v600, 1
        %v602 = vadd.f32 %v600, %v601
        %s603 = vtos %v602
        %s604 = sadd.f32 %s603, 0.0
        %s605 = sadd.f32 %s604, %s592
        %v606 = vlaneseq
        %v607 = vshrl.u32 %v606, 7
        %v608 = vlaneseq
        %v609 = vand.u32 %v608, 127
        %vm610 = vcmp.eq.s32.totalorder %v607, 0
        %vm611 = vcmp.eq.s32.totalorder %v609, 0
        %vm612 = vmand %vm610, %vm611
        %v613 = vstv %s605
        %v614 = vsel %vm612, %v613, 0.0
        %615 = vst [vmem:[%s198] sm:$0xff] %v614
        %s616 = sand.u32 %s82, 1
        %s617 = scalar_lea.sflag [#allocation4], %s616
        %s618 = sand.u32 %s82, 1
        %s619 = smul.addr %s618, 8
        %s620 = scalar_lea.vmem [#allocation7], %s619
        // Predicated region
        $region37: #{tpu_custom_call.1} parent=27 // pred_check
          %p621 = pneg %p92
        $region38: #{tpu_custom_call.1} parent=27 // pred_check_branch
          %623 = sbr.rel (%p621) target = $region40
        $region39: #{tpu_custom_call.1} parent=27 // pred_region
          %s625 = ssub.s32 128, 128
          %626 = vsyncadd %s617, %s625
          %s627 = smul.addr %s22, 128
          %s628 = scalar_lea.hbm %s2, %s627
          %s630 = sshll.u32 %s620, 4
          %s631 = int_to_ptr.vmem [resolvable:$true] %s630
          %633 = dma.vmem_to_hbm [thread:$0]  %s631, 128, %s628, %s617
        $region40: #{tpu_custom_call.1} parent=27 // pred_fallthru
          _
      $region28: #{tpu_custom_call.1} parent=5 // pred_fallthru
        _
      %p634 = scmp.le.s32.totalorder 2, %s17
      // Predicated region
      $region41: #{tpu_custom_call.1} parent=5 // pred_check
        %p635 = pneg %p634
      $region42: #{tpu_custom_call.1} parent=5 // pred_check_branch
        %637 = sbr.rel (%p635) target = $region44
      $region43: #{tpu_custom_call.1} parent=5 // pred_region
        %s638 = ssub.s32 %s17, 2
        // Predicated region
        $region45: #{tpu_custom_call.1} parent=43 // pred_check
          %p639 = pneg %p98
        $region46: #{tpu_custom_call.1} parent=43 // pred_check_branch
          %641 = sbr.rel (%p639) target = $region48
        $region47: #{tpu_custom_call.1} parent=43 // pred_region
          %s642 = sand.u32 %s83, 1
          %s643 = scalar_lea.sflag [#allocation4], %s642
          %s644 = sand.u32 %s83, 1
          %s645 = smul.addr %s644, 8
          %s646 = scalar_lea.vmem [#allocation7], %s645
          %647 = dma.done %s643, 128
        $region48: #{tpu_custom_call.1} parent=43 // pred_fallthru
          _
      $region44: #{tpu_custom_call.1} parent=5 // pred_fallthru
        _
    $region6: #{tpu_custom_call.1} parent=1 // loop_footer
      %s21 = sadd.s32 1, %s17
    $region7: #{tpu_custom_call.1} parent=1 // loop_footer_branch
      %16 = sbr.rel target = $region3
    $region8: #{tpu_custom_call.1} parent=1 // loop_exit
      _
    %648 = vsyncpa [#allocation3], 1
    %s649 = scalar_lea.sflag [#allocation3], 1
    %650 = vsyncpa %s649, 1
    %651 = vsyncpa [#allocation6], 1
    %s652 = scalar_lea.sflag [#allocation6], 1
    %653 = vsyncpa %s652, 1
    %654 = vsyncpa [#allocation4], 1
    %s655 = scalar_lea.sflag [#allocation4], 1
    %656 = vsyncpa %s655, 1

</llo_original>
